<compile_context>
chip_gen: v6e
topology: v6e:2x2x1
jax: 0.10.0
libtpu: 0.0.40
codegen_flags: <defaults>
</compile_context>

<pallas_src>
import jax
import jax.numpy as jnp
from jax.experimental import pallas as pl
from jax.experimental.pallas import tpu as pltpu

_DEFAULT_TILE_BYTES = 4 << 20   # f32 output bytes per grid step (double-buffered by Pallas)
_BYTES_PER_ELEM = 4             # kernel computes in f32


def _poi2d_sep_kernel(x1_ref, x2r_ref, pa_ref, out_ref):
    # x1_ref : (TM, 1)  f32 VMEM -- x-coordinates for this row tile (column layout)
    # x2r_ref: (1, TN)  f32 VMEM -- y-coordinates for this column tile (row layout)
    # pa_ref : (1,)     f32 SMEM -- param_a
    # out_ref: (TM, TN) f32 VMEM
    neg_pa = -pa_ref[0]

    c = x1_ref[...]                       # (TM, 1)
    a_col = neg_pa * (c * c - c)          # scale the O(TM) vector, not the O(TM*TN) tile

    r = x2r_ref[...]                      # (1, TN)
    b_row = neg_pa * (r * r - r)          # scale the O(TN) vector

    # O(TM*TN) stage: one broadcasted vadd per output vreg feeding lane-dense stores.
    out_ref[...] = a_col + b_row


def _round_up(x, m):
    return ((x + m - 1) // m) * m


def _choose_tiles(n1, n2, tile_bytes):
    """Pick (tm, tn) output tile obeying the (8,128)/full-extent rules."""
    rows_budget = tile_bytes // (n2 * _BYTES_PER_ELEM)
    if rows_budget >= 8 or rows_budget >= n1:
        # Preferred: full-row tiles -> one contiguous HBM writeback per step.
        tn = n2
        tm = n1 if rows_budget >= n1 else (rows_budget // 8) * 8
    else:
        # N2 too large for even 8 full rows in budget: wide-and-short tiles.
        tn = max(min((n2 // 128) * 128, 2048), 128)
        rows = max((tile_bytes // (tn * _BYTES_PER_ELEM)) // 8 * 8, 8)
        tm = n1 if rows >= n1 else rows

    # Degenerate-grid guard: keep >=2 grid steps along the (parallel) row axis
    # so a dual-TensorCore chip (v7x) shards the writeback across both cores.
    if pl.cdiv(n1, tm) * pl.cdiv(n2, tn) < 2 and n1 >= 16:
        tm = _round_up(-(-n1 // 2), 8)   # ceil(n1/2) rounded up to a multiple of 8 (< n1)
    return tm, tn


def poi2d_with_a_sep(quad_x, param_a, *, tile_bytes=_DEFAULT_TILE_BYTES):
    """quad_x = (x1, x2) with shapes (N1, 1), (N2, 1); param_a scalar.

    Returns (out, out) with out.shape == (N1, N2), matching the torch module.
    """
    x1, x2 = quad_x
    assert x1.ndim == 2 and x1.shape[1] == 1, "quad_x[0] must be (N1, 1)"
    assert x2.ndim == 2 and x2.shape[1] == 1, "quad_x[1] must be (N2, 1)"
    n1, n2 = x1.shape[0], x2.shape[0]

    x1 = x1.astype(jnp.float32)
    # Present the column tensor x2 as a (1, N2) row so the kernel needs no
    # in-kernel transpose; allow_input_fusion lets XLA fold this reshape into
    # the pallas call instead of dispatching it as a separate HLO op.
    x2_row = jnp.reshape(x2.astype(jnp.float32), (1, n2))
    pa = jnp.reshape(jnp.asarray(param_a, dtype=jnp.float32), (1,))

    tm, tn = _choose_tiles(n1, n2, tile_bytes)
    grid = (pl.cdiv(n1, tm), pl.cdiv(n2, tn))

    # Double-buffered output tile + tiny inputs + headroom. Stays at the safe
    # 16 MiB floor for the default 4 MiB tile (fits every generation's default
    # scoped-VMEM limit and v7x's 64 MiB physical VMEM).
    tile_vmem = tm * tn * _BYTES_PER_ELEM
    vmem_limit = int(max(16 << 20, 2 * tile_vmem + 2 * (tm + tn) * _BYTES_PER_ELEM + (2 << 20)))

    cost = pl.CostEstimate(
        flops=int(n1 * n2 + 4 * (n1 + n2)),
        transcendentals=0,
        bytes_accessed=int(_BYTES_PER_ELEM * (n1 * n2 + n1 + n2 + 1)),
    )

    out = pl.pallas_call(
        _poi2d_sep_kernel,
        out_shape=jax.ShapeDtypeStruct((n1, n2), jnp.float32),
        grid=grid,
        in_specs=[
            pl.BlockSpec((tm, 1), lambda i, j: (i, 0)),    # x1 row-tile (constant in j)
            pl.BlockSpec((1, tn), lambda i, j: (0, j)),    # x2 col-tile (constant in i)
            pl.BlockSpec(memory_space=pltpu.SMEM),         # param_a scalar
        ],
        out_specs=pl.BlockSpec((tm, tn), lambda i, j: (i, j)),
        compiler_params=pltpu.CompilerParams(
            dimension_semantics=("parallel", "parallel"),
            vmem_limit_bytes=vmem_limit,
            # boolean-per-operand: only the reshaped x2 row may be fused.
            allow_input_fusion=[False, True, False],
        ),
        cost_estimate=cost,
    )(x1, x2_row, pa)

    # Module returns the same tensor twice.
    return out, out


if __name__ == "__main__":
    key = jax.random.PRNGKey(0)
    k1, k2 = jax.random.split(key)

    # Lane/sublane-friendly quadrature sizes. With the default 4 MiB tile
    # budget the whole output fits one tile, so the degenerate-grid guard kicks
    # in and produces a (2, 1) grid of full-row 256x768 tiles.
    N1, N2 = 512, 768
    x1 = jax.random.uniform(k1, (N1, 1), dtype=jnp.float32)
    x2 = jax.random.uniform(k2, (N2, 1), dtype=jnp.float32)
    param_a = jnp.float32(0.75)

    out, out_again = poi2d_with_a_sep((x1, x2), param_a)
    out = jax.block_until_ready(out)

    # Pure-JAX reference.
    a = x1[:, 0] ** 2 - x1[:, 0]
    b = x2[:, 0] ** 2 - x2[:, 0]
    ref = -param_a * (a[:, None] + b[None, :])

    assert out.shape == (N1, N2)
    assert out_again is out, "module returns the same tensor twice"
    assert jnp.allclose(out, ref, atol=1e-5, rtol=1e-5), "mismatch vs reference"
    print("KERNEL_OK")
</pallas_src>

<mosaic_0001>
module attributes {stable_mosaic.version = 11 : i64} {
  func.func @_poi2d_sep_kernel(%arg0: i32, %arg1: i32, %arg2: memref<256x1xf32, #tpu.memory_space<vmem>>, %arg3: memref<1x768xf32, #tpu.memory_space<vmem>>, %arg4: memref<1xf32, #tpu.memory_space<smem>>, %arg5: memref<256x768xf32, #tpu.memory_space<vmem>>) attributes {dimension_semantics = [#tpu.dimension_semantics<parallel>, #tpu.dimension_semantics<parallel>], iteration_bounds = array<i64: 2, 1>, scalar_prefetch = 0 : i64, scratch_operands = 0 : i64, tpu.core_type = #tpu.core_type<tc>, window_params = [{transform_indices = @transform_0, window_bounds = array<i64: 256, 1>}, {transform_indices = @transform_1, window_bounds = array<i64: 1, 768>}, {transform_indices = @transform_2, window_bounds = array<i64: 1>}, {transform_indices = @transform_3, window_bounds = array<i64: 256, 768>}]} {
    %c0 = arith.constant 0 : index
    %0 = memref.load %arg4[%c0] : memref<1xf32, #tpu.memory_space<smem>>
    %cst = arith.constant 0.000000e+00 : f32
    %1 = arith.subf %cst, %0 : f32
    %c0_0 = arith.constant 0 : index
    %c0_1 = arith.constant 0 : index
    %2 = vector.load %arg2[%c0_0, %c0_1] : memref<256x1xf32, #tpu.memory_space<vmem>>, vector<256x1xf32>
    %3 = arith.mulf %2, %2 : vector<256x1xf32>
    %4 = arith.subf %3, %2 : vector<256x1xf32>
    %5 = vector.broadcast %1 : f32 to vector<256x1xf32>
    %6 = arith.mulf %5, %4 : vector<256x1xf32>
    %c0_2 = arith.constant 0 : index
    %c0_3 = arith.constant 0 : index
    %7 = vector.load %arg3[%c0_2, %c0_3] : memref<1x768xf32, #tpu.memory_space<vmem>>, vector<1x768xf32>
    %8 = arith.mulf %7, %7 : vector<1x768xf32>
    %9 = arith.subf %8, %7 : vector<1x768xf32>
    %10 = vector.broadcast %1 : f32 to vector<1x768xf32>
    %11 = arith.mulf %10, %9 : vector<1x768xf32>
    %12 = vector.broadcast %6 : vector<256x1xf32> to vector<256x768xf32>
    %13 = vector.broadcast %11 : vector<1x768xf32> to vector<256x768xf32>
    %14 = arith.addf %12, %13 : vector<256x768xf32>
    %c0_4 = arith.constant 0 : index
    %c0_5 = arith.constant 0 : index
    %15 = vector.load %arg5[%c0_4, %c0_5] : memref<256x768xf32, #tpu.memory_space<vmem>>, vector<256x768xf32>
    tpu.vector_store %arg5[%c0_4, %c0_5], %14 {strides = array<i32>} : memref<256x768xf32, #tpu.memory_space<vmem>>, vector<256x768xf32>,
    return
  }
  func.func @transform_0(%arg0: i32, %arg1: i32) -> (i32, i32) {
    %c0_i32 = arith.constant 0 : i32
    %c0_i32_0 = arith.constant 0 : i32
    return %arg0, %c0_i32 : i32, i32
  }
  func.func @transform_1(%arg0: i32, %arg1: i32) -> (i32, i32) {
    %c0_i32 = arith.constant 0 : i32
    %c0_i32_0 = arith.constant 0 : i32
    return %c0_i32, %arg1 : i32, i32
  }
  func.func @transform_2(%arg0: i32, %arg1: i32) -> i32 {
    %c0_i32 = arith.constant 0 : i32
    %c0_i32_0 = arith.constant 0 : i32
    return %c0_i32 : i32
  }
  func.func @transform_3(%arg0: i32, %arg1: i32) -> (i32, i32) {
    %c0_i32 = arith.constant 0 : i32
    return %arg0, %arg1 : i32, i32
  }
}

</mosaic_0001>

<llo_original>
// kernel: tpu_custom_call.1
$region0: #{tpu_custom_call.1}
  #allocation0 [shape = 'u32[]', space=smem, size = 0x4, offset = 0x4, fixed_abs, tag = 'smem constant byte address 0x4 - core index']
  #allocation1 [shape = 'u32[144,128]{1,0:T(1,128)}', space=vmem, size = 0x12000, scoped, tag = 'internal scratch']
  #allocation2 [shape = 'f32[1]{0:T(128)S(6)}', space=smem, size = 0x200, scoped, tag = 'scoped memory for tpu_custom_call.1']
  %s0 = inlined_call_operand.vmem [shape: f32[512,1], index: 0, kind: input, shape index: {}]
  %s1 = inlined_call_operand.hbm [shape: f32[1,768], index: 1, kind: input, shape index: {}]
  %s2 = inlined_call_operand.<no memory space> [shape: f32[1], index: 2, kind: input, shape index: {}]
  %s3 = inlined_call_operand.hbm [shape: f32[512,768], index: 3, kind: output, shape index: {}]
  %s4 = sld [smem:[#allocation0]]
  $region49: #{tpu_custom_call.1} parent=0
    _
  %s6 = ssub.s32 1, %s4
  %s7 = scalar_select 0, %s6, %s4
  %8 = sst [smem:[#allocation2]] %s2
  $region1: #{tpu_custom_call.1} parent=0
    #allocation3 [shape = 'u8[3072]{0}', space=vmem, size = 0xc00, scoped, tag = 'input window, operand 1, single buffered']
    #allocation4 [shape = 's32[2]{0}', space=sflag, size = 0x8, scoped, tag = 'scoped memory for tpu_custom_call.1']
    #allocation5 [shape = 's32[2]{0}', space=sflag, size = 0x8, scoped, tag = 'scoped memory for tpu_custom_call.1']
    #allocation6 [shape = 'u8[1572864]{0}', space=vmem, size = 0x180000, scoped, tag = 'output window, operand 0']
    %9 = vsyncpa [#allocation4], 0
    %10 = vsyncpa [#allocation5], 0
    %s11 = scalar_lea.sflag [#allocation5], 1
    %12 = vsyncpa %s11, 0
    loop: start=0, step=1, limit=4
    $region2: #{tpu_custom_call.1} parent=1 // loop_pre_header
      _
    $region3: #{tpu_custom_call.1} parent=1 // loop_header
      %s14 = sphi 0, %s18
      %p15 = scmp.ge.s32.totalorder %s14, 4
      %s21 = sphi 0, %s33
      %s22 = sphi 0, %s29
      %s23 = sphi 0, %s21
      %s24 = sphi 0, %s22
      %s25 = sphi 0, %s23
      %s26 = sphi 0, %s24
      %s36 = sphi 0, %s38
      %s39 = sphi 0, %s36
      %s40 = sphi 0, %s39
      %s56 = sphi 0, %s40
      %s62 = sphi 0, %s64
      %s65 = sphi 0, %s62
      %s66 = sphi 0, %s65
      %s82 = sphi 0, %s66
      %s86 = sphi 0, %s86
      %s88 = sphi 0, %s86
      %s89 = sphi 0, %s88
      %s103 = sphi 0, %s89
      %s111 = sphi 0, %s113
      %s114 = sphi 0, %s111
      %s115 = sphi 0, %s114
      %s131 = sphi 0, %s115
    $region4: #{tpu_custom_call.1} parent=1 // loop_header_branch
      %17 = sbr.rel (%p15) target = $region8
    $region5: #{tpu_custom_call.1} parent=1 // loop_body
      %s19 = ssub.s32 %s14, 1
      %s20 = ssub.s32 %s14, 2
      %s27 = sadd.s32 1, %s22
      %p28 = scmp.ge.s32.totalorder %s27, 1
      %s29 = scalar_select %p28, 0, %s27
      %s30 = sadd.s32 1, %s21
      %s31 = scalar_select %p28, %s30, %s21
      %p32 = scmp.ge.s32.totalorder %s31, 2
      %s33 = scalar_select %p32, 0, %s31
      %s34 = ssub.s32 %s21, %s33
      %p35 = scmp.eq.s32.totalorder %s34, 0
      %s37 = sadd.s32 %s36, 1
      %s38 = scalar_select %p35, %s36, %s37
      %p41 = pneg %p35
      %p42 = scmp.eq.s32.totalorder %s14, 1
      %p43 = por %p41, %p42
      %p44 = scmp.ne.s32.totalorder %s36, %s39
      %p45 = scmp.eq.s32.totalorder %s14, 0
      %p46 = por %p44, %p45
      %p47 = scmp.ne.s32.totalorder %s36, %s39
      %p48 = scmp.eq.s32.totalorder %s19, 1
      %p49 = por %p47, %p48
      %p50 = scmp.ne.s32.totalorder %s39, %s40
      %p51 = scmp.eq.s32.totalorder %s19, 0
      %p52 = por %p50, %p51
      %p53 = scmp.ne.s32.totalorder %s39, %s40
      %p54 = scmp.eq.s32.totalorder %s20, 1
      %p55 = por %p53, %p54
      %p57 = scmp.ne.s32.totalorder %s40, %s56
      %p58 = scmp.eq.s32.totalorder %s20, 0
      %p59 = por %p57, %p58
      %s60 = ssub.s32 %s22, %s29
      %p61 = scmp.eq.s32.totalorder %s60, 0
      %s63 = sadd.s32 %s62, 1
      %s64 = scalar_select %p61, %s62, %s63
      %p67 = pneg %p61
      %p68 = scmp.eq.s32.totalorder %s14, 1
      %p69 = por %p67, %p68
      %p70 = scmp.ne.s32.totalorder %s62, %s65
      %p71 = scmp.eq.s32.totalorder %s14, 0
      %p72 = por %p70, %p71
      %p73 = scmp.ne.s32.totalorder %s62, %s65
      %p74 = scmp.eq.s32.totalorder %s19, 1
      %p75 = por %p73, %p74
      %p76 = scmp.ne.s32.totalorder %s65, %s66
      %p77 = scmp.eq.s32.totalorder %s19, 0
      %p78 = por %p76, %p77
      %p79 = scmp.ne.s32.totalorder %s65, %s66
      %p80 = scmp.eq.s32.totalorder %s20, 1
      %p81 = por %p79, %p80
      %p83 = scmp.ne.s32.totalorder %s66, %s82
      %p84 = scmp.eq.s32.totalorder %s20, 0
      %p85 = por %p83, %p84
      %s87 = sadd.s32 %s86, 1
      %p90 = scmp.eq.s32.totalorder %s14, 1
      %p91 = scmp.ne.s32.totalorder %s86, %s88
      %p92 = scmp.eq.s32.totalorder %s14, 0
      %p93 = por %p91, %p92
      %p94 = scmp.ne.s32.totalorder %s86, %s88
      %p95 = scmp.eq.s32.totalorder %s19, 1
      %p96 = por %p94, %p95
      %p97 = scmp.ne.s32.totalorder %s88, %s89
      %p98 = scmp.eq.s32.totalorder %s19, 0
      %p99 = por %p97, %p98
      %p100 = scmp.ne.s32.totalorder %s88, %s89
      %p101 = scmp.eq.s32.totalorder %s20, 1
      %p102 = por %p100, %p101
      %p104 = scmp.ne.s32.totalorder %s89, %s103
      %p105 = scmp.eq.s32.totalorder %s20, 0
      %p106 = por %p104, %p105
      %s107 = ssub.s32 %s21, %s33
      %s108 = ssub.s32 %s22, %s29
      %s109 = sor.u32 %s107, %s108
      %p110 = scmp.eq.s32.totalorder %s109, 0
      %s112 = sadd.s32 %s111, 1
      %s113 = scalar_select %p110, %s111, %s112
      %p116 = pneg %p110
      %p117 = scmp.eq.s32.totalorder %s14, 1
      %p118 = por %p116, %p117
      %p119 = scmp.ne.s32.totalorder %s111, %s114
      %p120 = scmp.eq.s32.totalorder %s14, 0
      %p121 = por %p119, %p120
      %p122 = scmp.ne.s32.totalorder %s111, %s114
      %p123 = scmp.eq.s32.totalorder %s19, 1
      %p124 = por %p122, %p123
      %p125 = scmp.ne.s32.totalorder %s114, %s115
      %p126 = scmp.eq.s32.totalorder %s19, 0
      %p127 = por %p125, %p126
      %p128 = scmp.ne.s32.totalorder %s114, %s115
      %p129 = scmp.eq.s32.totalorder %s20, 1
      %p130 = por %p128, %p129
      %p132 = scmp.ne.s32.totalorder %s115, %s131
      %p133 = scmp.eq.s32.totalorder %s20, 0
      %p134 = por %p132, %p133
      %p135 = scmp.le.s32.totalorder 1, %s14
      %p136 = scmp.lt.s32.totalorder %s14, 3
      %p137 = pnand %p135, %p136
      %p138 = pneg %p137
      // Predicated region
      $region9: #{tpu_custom_call.1} parent=5 // pred_check
        _
      $region10: #{tpu_custom_call.1} parent=5 // pred_check_branch
        %140 = sbr.rel (%p137) target = $region12
      $region11: #{tpu_custom_call.1} parent=5 // pred_region
        %s141 = ssub.s32 %s14, 1
        // Predicated region
        $region13: #{tpu_custom_call.1} parent=11 // pred_check
          %p142 = pneg %p78
        $region14: #{tpu_custom_call.1} parent=11 // pred_check_branch
          %144 = sbr.rel (%p142) target = $region16
        $region15: #{tpu_custom_call.1} parent=11 // pred_region
          %s145 = smul.u32 6, %s24
          %s147 = ssub.s32 96, 96
          %148 = vsyncadd [#allocation4], %s147
          %s149 = smul.addr %s145, 16
          %s150 = scalar_lea.hbm %s1, %s149
          %s152 = sshll.u32 [#allocation3], 4
          %s153 = int_to_ptr.vmem [resolvable:$true] %s152
          %155 = dma.hbm_to_vmem [thread:$0]  %s150, 96, %s153, [#allocation4]
        $region16: #{tpu_custom_call.1} parent=11 // pred_fallthru
          _
        // Predicated region
        $region17: #{tpu_custom_call.1} parent=11 // pred_check
          %p156 = pneg %p99
        $region18: #{tpu_custom_call.1} parent=11 // pred_check_branch
          %158 = sbr.rel (%p156) target = $region20
        $region19: #{tpu_custom_call.1} parent=11 // pred_region
          _
        $region20: #{tpu_custom_call.1} parent=11 // pred_fallthru
          _
      $region12: #{tpu_custom_call.1} parent=5 // pred_fallthru
        _
      %p159 = scmp.lt.s32.totalorder %s14, 2
      // Predicated region
      $region21: #{tpu_custom_call.1} parent=5 // pred_check
        %p160 = pneg %p159
      $region22: #{tpu_custom_call.1} parent=5 // pred_check_branch
        %162 = sbr.rel (%p160) target = $region24
      $region23: #{tpu_custom_call.1} parent=5 // pred_region
        // Predicated region
        $region25: #{tpu_custom_call.1} parent=23 // pred_check
          %p163 = pneg %p46
        $region26: #{tpu_custom_call.1} parent=23 // pred_check_branch
          %165 = sbr.rel (%p163) target = $region28
        $region27: #{tpu_custom_call.1} parent=23 // pred_region
          %s166 = smul.u32 32, %s21
          %p167 = scmp.lt.s32.totalorder %s166, 63
          %s168 = scalar_select %p167, %s166, 63
          %s169 = smul.addr %s168, 8
          %s170 = scalar_lea.vmem %s0, %s169
          %s171 = smul.u32 32, %s21
        $region28: #{tpu_custom_call.1} parent=23 // pred_fallthru
          _
      $region24: #{tpu_custom_call.1} parent=5 // pred_fallthru
        _
      %p172 = scmp.le.s32.totalorder 1, %s14
      %p173 = scmp.lt.s32.totalorder %s14, 3
      %p174 = pnand %p172, %p173
      %p175 = pneg %p174
      // Predicated region
      $region29: #{tpu_custom_call.1} parent=5 // pred_check
        _
      $region30: #{tpu_custom_call.1} parent=5 // pred_check_branch
        %177 = sbr.rel (%p174) target = $region32
      $region31: #{tpu_custom_call.1} parent=5 // pred_region
        %s178 = ssub.s32 %s14, 1
        // Predicated region
        $region33: #{tpu_custom_call.1} parent=31 // pred_check
          %p179 = pneg %p78
        $region34: #{tpu_custom_call.1} parent=31 // pred_check_branch
          %181 = sbr.rel (%p179) target = $region36
        $region35: #{tpu_custom_call.1} parent=31 // pred_region
          %182 = dma.done [#allocation4], 96
        $region36: #{tpu_custom_call.1} parent=31 // pred_fallthru
          _
        %s183 = smul.u32 32, %s23
        %p184 = scmp.lt.s32.totalorder %s183, 63
        %s185 = scalar_select %p184, %s183, 63
        %s186 = smul.addr %s185, 8
        %s187 = scalar_lea.vmem %s0, %s186
        %p188 = pneg %p52
        %p189 = pneg %p49
        %p190 = pneg %p78
        %p191 = pneg %p75
        %p192 = pneg %p99
        %p193 = pneg %p96
        %p194 = pneg %p127
        %p195 = pneg %p124
        %s196 = sand.u32 %s114, 1
        %s197 = scalar_lea.sflag [#allocation5], %s196
        %s198 = sand.u32 %s114, 1
        %s199 = smul.addr %s198, 1536
        %s200 = scalar_lea.vmem [#allocation6], %s199
        %s201 = smul.u32 32, %s23
        %p202 = scmp.lt.s32.totalorder %s201, 63
        %s203 = scalar_select %p202, %s201, 63
        %s204 = smul.addr %s203, 8
        %s205 = scalar_lea.vmem %s0, %s204
        %s206 = smul.u32 32, %s23
        %s207 = smul.u32 6, %s24
        %s208 = smul.u32 32, %s23
        %s209 = smul.u32 6, %s24
        %s210 = sld [smem:[#allocation2]]
        %s211 = ssub.f32 0.0, %s210
        %v212 = vld [vmem:[%s205] sm:$0xff]
        %v213 = vld [vmem:[%s205 + $0x8] sm:$0xff]
        %v214 = vld [vmem:[%s205 + $0x10] sm:$0xff]
        %v215 = vld [vmem:[%s205 + $0x18] sm:$0xff]
        %v216 = vld [vmem:[%s205 + $0x20] sm:$0xff]
        %v217 = vld [vmem:[%s205 + $0x28] sm:$0xff]
        %v218 = vld [vmem:[%s205 + $0x30] sm:$0xff]
        %v219 = vld [vmem:[%s205 + $0x38] sm:$0xff]
        %v220 = vld [vmem:[%s205 + $0x40] sm:$0xff]
        %v221 = vld [vmem:[%s205 + $0x48] sm:$0xff]
        %v222 = vld [vmem:[%s205 + $0x50] sm:$0xff]
        %v223 = vld [vmem:[%s205 + $0x58] sm:$0xff]
        %v224 = vld [vmem:[%s205 + $0x60] sm:$0xff]
        %v225 = vld [vmem:[%s205 + $0x68] sm:$0xff]
        %v226 = vld [vmem:[%s205 + $0x70] sm:$0xff]
        %v227 = vld [vmem:[%s205 + $0x78] sm:$0xff]
        %v228 = vld [vmem:[%s205 + $0x80] sm:$0xff]
        %v229 = vld [vmem:[%s205 + $0x88] sm:$0xff]
        %v230 = vld [vmem:[%s205 + $0x90] sm:$0xff]
        %v231 = vld [vmem:[%s205 + $0x98] sm:$0xff]
        %v232 = vld [vmem:[%s205 + $0xa0] sm:$0xff]
        %v233 = vld [vmem:[%s205 + $0xa8] sm:$0xff]
        %v234 = vld [vmem:[%s205 + $0xb0] sm:$0xff]
        %v235 = vld [vmem:[%s205 + $0xb8] sm:$0xff]
        %v236 = vld [vmem:[%s205 + $0xc0] sm:$0xff]
        %v237 = vld [vmem:[%s205 + $0xc8] sm:$0xff]
        %v238 = vld [vmem:[%s205 + $0xd0] sm:$0xff]
        %v239 = vld [vmem:[%s205 + $0xd8] sm:$0xff]
        %v240 = vld [vmem:[%s205 + $0xe0] sm:$0xff]
        %v241 = vld [vmem:[%s205 + $0xe8] sm:$0xff]
        %v242 = vld [vmem:[%s205 + $0xf0] sm:$0xff]
        %v243 = vld [vmem:[%s205 + $0xf8] sm:$0xff]
        %v244 = vmul.f32 %v212, %v212
        %v245 = vmul.f32 %v213, %v213
        %v246 = vmul.f32 %v214, %v214
        %v247 = vmul.f32 %v215, %v215
        %v248 = vmul.f32 %v216, %v216
        %v249 = vmul.f32 %v217, %v217
        %v250 = vmul.f32 %v218, %v218
        %v251 = vmul.f32 %v219, %v219
        %v252 = vmul.f32 %v220, %v220
        %v253 = vmul.f32 %v221, %v221
        %v254 = vmul.f32 %v222, %v222
        %v255 = vmul.f32 %v223, %v223
        %v256 = vmul.f32 %v224, %v224
        %v257 = vmul.f32 %v225, %v225
        %v258 = vmul.f32 %v226, %v226
        %v259 = vmul.f32 %v227, %v227
        %v260 = vmul.f32 %v228, %v228
        %v261 = vmul.f32 %v229, %v229
        %v262 = vmul.f32 %v230, %v230
        %v263 = vmul.f32 %v231, %v231
        %v264 = vmul.f32 %v232, %v232
        %v265 = vmul.f32 %v233, %v233
        %v266 = vmul.f32 %v234, %v234
        %v267 = vmul.f32 %v235, %v235
        %v268 = vmul.f32 %v236, %v236
        %v269 = vmul.f32 %v237, %v237
        %v270 = vmul.f32 %v238, %v238
        %v271 = vmul.f32 %v239, %v239
        %v272 = vmul.f32 %v240, %v240
        %v273 = vmul.f32 %v241, %v241
        %v274 = vmul.f32 %v242, %v242
        %v275 = vmul.f32 %v243, %v243
        %v276 = vsub.f32 %v244, %v212
        %v277 = vsub.f32 %v245, %v213
        %v278 = vsub.f32 %v246, %v214
        %v279 = vsub.f32 %v247, %v215
        %v280 = vsub.f32 %v248, %v216
        %v281 = vsub.f32 %v249, %v217
        %v282 = vsub.f32 %v250, %v218
        %v283 = vsub.f32 %v251, %v219
        %v284 = vsub.f32 %v252, %v220
        %v285 = vsub.f32 %v253, %v221
        %v286 = vsub.f32 %v254, %v222
        %v287 = vsub.f32 %v255, %v223
        %v288 = vsub.f32 %v256, %v224
        %v289 = vsub.f32 %v257, %v225
        %v290 = vsub.f32 %v258, %v226
        %v291 = vsub.f32 %v259, %v227
        %v292 = vsub.f32 %v260, %v228
        %v293 = vsub.f32 %v261, %v229
        %v294 = vsub.f32 %v262, %v230
        %v295 = vsub.f32 %v263, %v231
        %v296 = vsub.f32 %v264, %v232
        %v297 = vsub.f32 %v265, %v233
        %v298 = vsub.f32 %v266, %v234
        %v299 = vsub.f32 %v267, %v235
        %v300 = vsub.f32 %v268, %v236
        %v301 = vsub.f32 %v269, %v237
        %v302 = vsub.f32 %v270, %v238
        %v303 = vsub.f32 %v271, %v239
        %v304 = vsub.f32 %v272, %v240
        %v305 = vsub.f32 %v273, %v241
        %v306 = vsub.f32 %v274, %v242
        %v307 = vsub.f32 %v275, %v243
        %v308 = vstv %s211
        %v309 = vmul.f32 %v308, %v276
        %v310 = vmul.f32 %v308, %v277
        %v311 = vmul.f32 %v308, %v278
        %v312 = vmul.f32 %v308, %v279
        %v313 = vmul.f32 %v308, %v280
        %v314 = vmul.f32 %v308, %v281
        %v315 = vmul.f32 %v308, %v282
        %v316 = vmul.f32 %v308, %v283
        %v317 = vmul.f32 %v308, %v284
        %v318 = vmul.f32 %v308, %v285
        %v319 = vmul.f32 %v308, %v286
        %v320 = vmul.f32 %v308, %v287
        %v321 = vmul.f32 %v308, %v288
        %v322 = vmul.f32 %v308, %v289
        %v323 = vmul.f32 %v308, %v290
        %v324 = vmul.f32 %v308, %v291
        %v325 = vmul.f32 %v308, %v292
        %v326 = vmul.f32 %v308, %v293
        %v327 = vmul.f32 %v308, %v294
        %v328 = vmul.f32 %v308, %v295
        %v329 = vmul.f32 %v308, %v296
        %v330 = vmul.f32 %v308, %v297
        %v331 = vmul.f32 %v308, %v298
        %v332 = vmul.f32 %v308, %v299
        %v333 = vmul.f32 %v308, %v300
        %v334 = vmul.f32 %v308, %v301
        %v335 = vmul.f32 %v308, %v302
        %v336 = vmul.f32 %v308, %v303
        %v337 = vmul.f32 %v308, %v304
        %v338 = vmul.f32 %v308, %v305
        %v339 = vmul.f32 %v308, %v306
        %v340 = vmul.f32 %v308, %v307
        %v341 = vld [vmem:[#allocation3] sm:$0x3f]
        %v342 = vmul.f32 %v341, %v341
        %v343 = vsub.f32 %v342, %v341
        %v344 = vmul.f32 %v308, %v343
        %346 = vset.pattern.permute.xlu0 0
        %347 = vperm.xlu0 %346, %v309
        %v348 = vpop.permute.xlu0 %347
        %351 = vset.pattern.permute.xlu0 0
        %352 = vperm.xlu0 %351, %v310
        %v353 = vpop.permute.xlu0 %352
        %356 = vset.pattern.permute.xlu0 0
        %357 = vperm.xlu0 %356, %v311
        %v358 = vpop.permute.xlu0 %357
        %361 = vset.pattern.permute.xlu0 0
        %362 = vperm.xlu0 %361, %v312
        %v363 = vpop.permute.xlu0 %362
        %366 = vset.pattern.permute.xlu0 0
        %367 = vperm.xlu0 %366, %v313
        %v368 = vpop.permute.xlu0 %367
        %371 = vset.pattern.permute.xlu0 0
        %372 = vperm.xlu0 %371, %v314
        %v373 = vpop.permute.xlu0 %372
        %376 = vset.pattern.permute.xlu0 0
        %377 = vperm.xlu0 %376, %v315
        %v378 = vpop.permute.xlu0 %377
        %381 = vset.pattern.permute.xlu0 0
        %382 = vperm.xlu0 %381, %v316
        %v383 = vpop.permute.xlu0 %382
        %386 = vset.pattern.permute.xlu0 0
        %387 = vperm.xlu0 %386, %v317
        %v388 = vpop.permute.xlu0 %387
        %391 = vset.pattern.permute.xlu0 0
        %392 = vperm.xlu0 %391, %v318
        %v393 = vpop.permute.xlu0 %392
        %396 = vset.pattern.permute.xlu0 0
        %397 = vperm.xlu0 %396, %v319
        %v398 = vpop.permute.xlu0 %397
        %401 = vset.pattern.permute.xlu0 0
        %402 = vperm.xlu0 %401, %v320
        %v403 = vpop.permute.xlu0 %402
        %406 = vset.pattern.permute.xlu0 0
        %407 = vperm.xlu0 %406, %v321
        %v408 = vpop.permute.xlu0 %407
        %411 = vset.pattern.permute.xlu0 0
        %412 = vperm.xlu0 %411, %v322
        %v413 = vpop.permute.xlu0 %412
        %416 = vset.pattern.permute.xlu0 0
        %417 = vperm.xlu0 %416, %v323
        %v418 = vpop.permute.xlu0 %417
        %421 = vset.pattern.permute.xlu0 0
        %422 = vperm.xlu0 %421, %v324
        %v423 = vpop.permute.xlu0 %422
        %426 = vset.pattern.permute.xlu0 0
        %427 = vperm.xlu0 %426, %v325
        %v428 = vpop.permute.xlu0 %427
        %431 = vset.pattern.permute.xlu0 0
        %432 = vperm.xlu0 %431, %v326
        %v433 = vpop.permute.xlu0 %432
        %436 = vset.pattern.permute.xlu0 0
        %437 = vperm.xlu0 %436, %v327
        %v438 = vpop.permute.xlu0 %437
        %441 = vset.pattern.permute.xlu0 0
        %442 = vperm.xlu0 %441, %v328
        %v443 = vpop.permute.xlu0 %442
        %446 = vset.pattern.permute.xlu0 0
        %447 = vperm.xlu0 %446, %v329
        %v448 = vpop.permute.xlu0 %447
        %451 = vset.pattern.permute.xlu0 0
        %452 = vperm.xlu0 %451, %v330
        %v453 = vpop.permute.xlu0 %452
        %456 = vset.pattern.permute.xlu0 0
        %457 = vperm.xlu0 %456, %v331
        %v458 = vpop.permute.xlu0 %457
        %461 = vset.pattern.permute.xlu0 0
        %462 = vperm.xlu0 %461, %v332
        %v463 = vpop.permute.xlu0 %462
        %466 = vset.pattern.permute.xlu0 0
        %467 = vperm.xlu0 %466, %v333
        %v468 = vpop.permute.xlu0 %467
        %471 = vset.pattern.permute.xlu0 0
        %472 = vperm.xlu0 %471, %v334
        %v473 = vpop.permute.xlu0 %472
        %476 = vset.pattern.permute.xlu0 0
        %477 = vperm.xlu0 %476, %v335
        %v478 = vpop.permute.xlu0 %477
        %481 = vset.pattern.permute.xlu0 0
        %482 = vperm.xlu0 %481, %v336
        %v483 = vpop.permute.xlu0 %482
        %486 = vset.pattern.permute.xlu0 0
        %487 = vperm.xlu0 %486, %v337
        %v488 = vpop.permute.xlu0 %487
        %491 = vset.pattern.permute.xlu0 0
        %492 = vperm.xlu0 %491, %v338
        %v493 = vpop.permute.xlu0 %492
        %496 = vset.pattern.permute.xlu0 0
        %497 = vperm.xlu0 %496, %v339
        %v498 = vpop.permute.xlu0 %497
        %501 = vset.pattern.permute.xlu0 0
        %502 = vperm.xlu0 %501, %v340
        %v503 = vpop.permute.xlu0 %502
        %v506 = vlaneseq
        %v507 = vshrl.u32 %v506, 7
        %v508 = vsub.s32 0, %v507
        %v509 = vrot.slane %v344, %v508
        %v510 = vlaneseq
        %v511 = vshrl.u32 %v510, 7
        %v512 = vsub.s32 1, %v511
        %v513 = vrot.slane %v344, %v512
        %v514 = vlaneseq
        %v515 = vshrl.u32 %v514, 7
        %v516 = vsub.s32 2, %v515
        %v517 = vrot.slane %v344, %v516
        %v518 = vlaneseq
        %v519 = vshrl.u32 %v518, 7
        %v520 = vsub.s32 3, %v519
        %v521 = vrot.slane %v344, %v520
        %v522 = vlaneseq
        %v523 = vshrl.u32 %v522, 7
        %v524 = vsub.s32 4, %v523
        %v525 = vrot.slane %v344, %v524
        %v526 = vlaneseq
        %v527 = vshrl.u32 %v526, 7
        %v528 = vsub.s32 5, %v527
        %v529 = vrot.slane %v344, %v528
        %v536 = vadd.f32 %v348, %v509
        %v537 = vadd.f32 %v348, %v513
        %v538 = vadd.f32 %v348, %v517
        %v539 = vadd.f32 %v348, %v521
        %v540 = vadd.f32 %v348, %v525
        %v541 = vadd.f32 %v348, %v529
        %v542 = vadd.f32 %v353, %v509
        %v543 = vadd.f32 %v353, %v513
        %v544 = vadd.f32 %v353, %v517
        %v545 = vadd.f32 %v353, %v521
        %v546 = vadd.f32 %v353, %v525
        %v547 = vadd.f32 %v353, %v529
        %v548 = vadd.f32 %v358, %v509
        %v549 = vadd.f32 %v358, %v513
        %v550 = vadd.f32 %v358, %v517
        %v551 = vadd.f32 %v358, %v521
        %v552 = vadd.f32 %v358, %v525
        %v553 = vadd.f32 %v358, %v529
        %v554 = vadd.f32 %v363, %v509
        %v555 = vadd.f32 %v363, %v513
        %v556 = vadd.f32 %v363, %v517
        %v557 = vadd.f32 %v363, %v521
        %v558 = vadd.f32 %v363, %v525
        %v559 = vadd.f32 %v363, %v529
        %v560 = vadd.f32 %v368, %v509
        %v561 = vadd.f32 %v368, %v513
        %v562 = vadd.f32 %v368, %v517
        %v563 = vadd.f32 %v368, %v521
        %v564 = vadd.f32 %v368, %v525
        %v565 = vadd.f32 %v368, %v529
        %v566 = vadd.f32 %v373, %v509
        %v567 = vadd.f32 %v373, %v513
        %v568 = vadd.f32 %v373, %v517
        %v569 = vadd.f32 %v373, %v521
        %v570 = vadd.f32 %v373, %v525
        %v571 = vadd.f32 %v373, %v529
        %v572 = vadd.f32 %v378, %v509
        %v573 = vadd.f32 %v378, %v513
        %v574 = vadd.f32 %v378, %v517
        %v575 = vadd.f32 %v378, %v521
        %v576 = vadd.f32 %v378, %v525
        %v577 = vadd.f32 %v378, %v529
        %v578 = vadd.f32 %v383, %v509
        %v579 = vadd.f32 %v383, %v513
        %v580 = vadd.f32 %v383, %v517
        %v581 = vadd.f32 %v383, %v521
        %v582 = vadd.f32 %v383, %v525
        %v583 = vadd.f32 %v383, %v529
        %v584 = vadd.f32 %v388, %v509
        %v585 = vadd.f32 %v388, %v513
        %v586 = vadd.f32 %v388, %v517
        %v587 = vadd.f32 %v388, %v521
        %v588 = vadd.f32 %v388, %v525
        %v589 = vadd.f32 %v388, %v529
        %v590 = vadd.f32 %v393, %v509
        %v591 = vadd.f32 %v393, %v513
        %v592 = vadd.f32 %v393, %v517
        %v593 = vadd.f32 %v393, %v521
        %v594 = vadd.f32 %v393, %v525
        %v595 = vadd.f32 %v393, %v529
        %v596 = vadd.f32 %v398, %v509
        %v597 = vadd.f32 %v398, %v513
        %v598 = vadd.f32 %v398, %v517
        %v599 = vadd.f32 %v398, %v521
        %v600 = vadd.f32 %v398, %v525
        %v601 = vadd.f32 %v398, %v529
        %v602 = vadd.f32 %v403, %v509
        %v603 = vadd.f32 %v403, %v513
        %v604 = vadd.f32 %v403, %v517
        %v605 = vadd.f32 %v403, %v521
        %v606 = vadd.f32 %v403, %v525
        %v607 = vadd.f32 %v403, %v529
        %v608 = vadd.f32 %v408, %v509
        %v609 = vadd.f32 %v408, %v513
        %v610 = vadd.f32 %v408, %v517
        %v611 = vadd.f32 %v408, %v521
        %v612 = vadd.f32 %v408, %v525
        %v613 = vadd.f32 %v408, %v529
        %v614 = vadd.f32 %v413, %v509
        %v615 = vadd.f32 %v413, %v513
        %v616 = vadd.f32 %v413, %v517
        %v617 = vadd.f32 %v413, %v521
        %v618 = vadd.f32 %v413, %v525
        %v619 = vadd.f32 %v413, %v529
        %v620 = vadd.f32 %v418, %v509
        %v621 = vadd.f32 %v418, %v513
        %v622 = vadd.f32 %v418, %v517
        %v623 = vadd.f32 %v418, %v521
        %v624 = vadd.f32 %v418, %v525
        %v625 = vadd.f32 %v418, %v529
        %v626 = vadd.f32 %v423, %v509
        %v627 = vadd.f32 %v423, %v513
        %v628 = vadd.f32 %v423, %v517
        %v629 = vadd.f32 %v423, %v521
        %v630 = vadd.f32 %v423, %v525
        %v631 = vadd.f32 %v423, %v529
        %v632 = vadd.f32 %v428, %v509
        %v633 = vadd.f32 %v428, %v513
        %v634 = vadd.f32 %v428, %v517
        %v635 = vadd.f32 %v428, %v521
        %v636 = vadd.f32 %v428, %v525
        %v637 = vadd.f32 %v428, %v529
        %v638 = vadd.f32 %v433, %v509
        %v639 = vadd.f32 %v433, %v513
        %v640 = vadd.f32 %v433, %v517
        %v641 = vadd.f32 %v433, %v521
        %v642 = vadd.f32 %v433, %v525
        %v643 = vadd.f32 %v433, %v529
        %v644 = vadd.f32 %v438, %v509
        %v645 = vadd.f32 %v438, %v513
        %v646 = vadd.f32 %v438, %v517
        %v647 = vadd.f32 %v438, %v521
        %v648 = vadd.f32 %v438, %v525
        %v649 = vadd.f32 %v438, %v529
        %v650 = vadd.f32 %v443, %v509
        %v651 = vadd.f32 %v443, %v513
        %v652 = vadd.f32 %v443, %v517
        %v653 = vadd.f32 %v443, %v521
        %v654 = vadd.f32 %v443, %v525
        %v655 = vadd.f32 %v443, %v529
        %v656 = vadd.f32 %v448, %v509
        %v657 = vadd.f32 %v448, %v513
        %v658 = vadd.f32 %v448, %v517
        %v659 = vadd.f32 %v448, %v521
        %v660 = vadd.f32 %v448, %v525
        %v661 = vadd.f32 %v448, %v529
        %v662 = vadd.f32 %v453, %v509
        %v663 = vadd.f32 %v453, %v513
        %v664 = vadd.f32 %v453, %v517
        %v665 = vadd.f32 %v453, %v521
        %v666 = vadd.f32 %v453, %v525
        %v667 = vadd.f32 %v453, %v529
        %v668 = vadd.f32 %v458, %v509
        %v669 = vadd.f32 %v458, %v513
        %v670 = vadd.f32 %v458, %v517
        %v671 = vadd.f32 %v458, %v521
        %v672 = vadd.f32 %v458, %v525
        %v673 = vadd.f32 %v458, %v529
        %v674 = vadd.f32 %v463, %v509
        %v675 = vadd.f32 %v463, %v513
        %v676 = vadd.f32 %v463, %v517
        %v677 = vadd.f32 %v463, %v521
        %v678 = vadd.f32 %v463, %v525
        %v679 = vadd.f32 %v463, %v529
        %v680 = vadd.f32 %v468, %v509
        %v681 = vadd.f32 %v468, %v513
        %v682 = vadd.f32 %v468, %v517
        %v683 = vadd.f32 %v468, %v521
        %v684 = vadd.f32 %v468, %v525
        %v685 = vadd.f32 %v468, %v529
        %v686 = vadd.f32 %v473, %v509
        %v687 = vadd.f32 %v473, %v513
        %v688 = vadd.f32 %v473, %v517
        %v689 = vadd.f32 %v473, %v521
        %v690 = vadd.f32 %v473, %v525
        %v691 = vadd.f32 %v473, %v529
        %v692 = vadd.f32 %v478, %v509
        %v693 = vadd.f32 %v478, %v513
        %v694 = vadd.f32 %v478, %v517
        %v695 = vadd.f32 %v478, %v521
        %v696 = vadd.f32 %v478, %v525
        %v697 = vadd.f32 %v478, %v529
        %v698 = vadd.f32 %v483, %v509
        %v699 = vadd.f32 %v483, %v513
        %v700 = vadd.f32 %v483, %v517
        %v701 = vadd.f32 %v483, %v521
        %v702 = vadd.f32 %v483, %v525
        %v703 = vadd.f32 %v483, %v529
        %v704 = vadd.f32 %v488, %v509
        %v705 = vadd.f32 %v488, %v513
        %v706 = vadd.f32 %v488, %v517
        %v707 = vadd.f32 %v488, %v521
        %v708 = vadd.f32 %v488, %v525
        %v709 = vadd.f32 %v488, %v529
        %v710 = vadd.f32 %v493, %v509
        %v711 = vadd.f32 %v493, %v513
        %v712 = vadd.f32 %v493, %v517
        %v713 = vadd.f32 %v493, %v521
        %v714 = vadd.f32 %v493, %v525
        %v715 = vadd.f32 %v493, %v529
        %v716 = vadd.f32 %v498, %v509
        %v717 = vadd.f32 %v498, %v513
        %v718 = vadd.f32 %v498, %v517
        %v719 = vadd.f32 %v498, %v521
        %v720 = vadd.f32 %v498, %v525
        %v721 = vadd.f32 %v498, %v529
        %v722 = vadd.f32 %v503, %v509
        %v723 = vadd.f32 %v503, %v513
        %v724 = vadd.f32 %v503, %v517
        %v725 = vadd.f32 %v503, %v521
        %v726 = vadd.f32 %v503, %v525
        %v727 = vadd.f32 %v503, %v529
        %728 = vst [vmem:[%s200] sm:$0xff] %v536
        %729 = vst [vmem:[%s200 + $0x8] sm:$0xff] %v537
        %730 = vst [vmem:[%s200 + $0x10] sm:$0xff] %v538
        %731 = vst [vmem:[%s200 + $0x18] sm:$0xff] %v539
        %732 = vst [vmem:[%s200 + $0x20] sm:$0xff] %v540
        %733 = vst [vmem:[%s200 + $0x28] sm:$0xff] %v541
        %734 = vst [vmem:[%s200 + $0x30] sm:$0xff] %v542
        %735 = vst [vmem:[%s200 + $0x38] sm:$0xff] %v543
        %736 = vst [vmem:[%s200 + $0x40] sm:$0xff] %v544
        %737 = vst [vmem:[%s200 + $0x48] sm:$0xff] %v545
        %738 = vst [vmem:[%s200 + $0x50] sm:$0xff] %v546
        %739 = vst [vmem:[%s200 + $0x58] sm:$0xff] %v547
        %740 = vst [vmem:[%s200 + $0x60] sm:$0xff] %v548
        %741 = vst [vmem:[%s200 + $0x68] sm:$0xff] %v549
        %742 = vst [vmem:[%s200 + $0x70] sm:$0xff] %v550
        %743 = vst [vmem:[%s200 + $0x78] sm:$0xff] %v551
        %744 = vst [vmem:[%s200 + $0x80] sm:$0xff] %v552
        %745 = vst [vmem:[%s200 + $0x88] sm:$0xff] %v553
        %746 = vst [vmem:[%s200 + $0x90] sm:$0xff] %v554
        %747 = vst [vmem:[%s200 + $0x98] sm:$0xff] %v555
        %748 = vst [vmem:[%s200 + $0xa0] sm:$0xff] %v556
        %749 = vst [vmem:[%s200 + $0xa8] sm:$0xff] %v557
        %750 = vst [vmem:[%s200 + $0xb0] sm:$0xff] %v558
        %751 = vst [vmem:[%s200 + $0xb8] sm:$0xff] %v559
        %752 = vst [vmem:[%s200 + $0xc0] sm:$0xff] %v560
        %753 = vst [vmem:[%s200 + $0xc8] sm:$0xff] %v561
        %754 = vst [vmem:[%s200 + $0xd0] sm:$0xff] %v562
        %755 = vst [vmem:[%s200 + $0xd8] sm:$0xff] %v563
        %756 = vst [vmem:[%s200 + $0xe0] sm:$0xff] %v564
        %757 = vst [vmem:[%s200 + $0xe8] sm:$0xff] %v565
        %758 = vst [vmem:[%s200 + $0xf0] sm:$0xff] %v566
        %759 = vst [vmem:[%s200 + $0xf8] sm:$0xff] %v567
        %760 = vst [vmem:[%s200 + $0x100] sm:$0xff] %v568
        %761 = vst [vmem:[%s200 + $0x108] sm:$0xff] %v569
        %762 = vst [vmem:[%s200 + $0x110] sm:$0xff] %v570
        %763 = vst [vmem:[%s200 + $0x118] sm:$0xff] %v571
        %764 = vst [vmem:[%s200 + $0x120] sm:$0xff] %v572
        %765 = vst [vmem:[%s200 + $0x128] sm:$0xff] %v573
        %766 = vst [vmem:[%s200 + $0x130] sm:$0xff] %v574
        %767 = vst [vmem:[%s200 + $0x138] sm:$0xff] %v575
        %768 = vst [vmem:[%s200 + $0x140] sm:$0xff] %v576
        %769 = vst [vmem:[%s200 + $0x148] sm:$0xff] %v577
        %770 = vst [vmem:[%s200 + $0x150] sm:$0xff] %v578
        %771 = vst [vmem:[%s200 + $0x158] sm:$0xff] %v579
        %772 = vst [vmem:[%s200 + $0x160] sm:$0xff] %v580
        %773 = vst [vmem:[%s200 + $0x168] sm:$0xff] %v581
        %774 = vst [vmem:[%s200 + $0x170] sm:$0xff] %v582
        %775 = vst [vmem:[%s200 + $0x178] sm:$0xff] %v583
        %776 = vst [vmem:[%s200 + $0x180] sm:$0xff] %v584
        %777 = vst [vmem:[%s200 + $0x188] sm:$0xff] %v585
        %778 = vst [vmem:[%s200 + $0x190] sm:$0xff] %v586
        %779 = vst [vmem:[%s200 + $0x198] sm:$0xff] %v587
        %780 = vst [vmem:[%s200 + $0x1a0] sm:$0xff] %v588
        %781 = vst [vmem:[%s200 + $0x1a8] sm:$0xff] %v589
        %782 = vst [vmem:[%s200 + $0x1b0] sm:$0xff] %v590
        %783 = vst [vmem:[%s200 + $0x1b8] sm:$0xff] %v591
        %784 = vst [vmem:[%s200 + $0x1c0] sm:$0xff] %v592
        %785 = vst [vmem:[%s200 + $0x1c8] sm:$0xff] %v593
        %786 = vst [vmem:[%s200 + $0x1d0] sm:$0xff] %v594
        %787 = vst [vmem:[%s200 + $0x1d8] sm:$0xff] %v595
        %788 = vst [vmem:[%s200 + $0x1e0] sm:$0xff] %v596
        %789 = vst [vmem:[%s200 + $0x1e8] sm:$0xff] %v597
        %790 = vst [vmem:[%s200 + $0x1f0] sm:$0xff] %v598
        %791 = vst [vmem:[%s200 + $0x1f8] sm:$0xff] %v599
        %792 = vst [vmem:[%s200 + $0x200] sm:$0xff] %v600
        %793 = vst [vmem:[%s200 + $0x208] sm:$0xff] %v601
        %794 = vst [vmem:[%s200 + $0x210] sm:$0xff] %v602
        %795 = vst [vmem:[%s200 + $0x218] sm:$0xff] %v603
        %796 = vst [vmem:[%s200 + $0x220] sm:$0xff] %v604
        %797 = vst [vmem:[%s200 + $0x228] sm:$0xff] %v605
        %798 = vst [vmem:[%s200 + $0x230] sm:$0xff] %v606
        %799 = vst [vmem:[%s200 + $0x238] sm:$0xff] %v607
        %800 = vst [vmem:[%s200 + $0x240] sm:$0xff] %v608
        %801 = vst [vmem:[%s200 + $0x248] sm:$0xff] %v609
        %802 = vst [vmem:[%s200 + $0x250] sm:$0xff] %v610
        %803 = vst [vmem:[%s200 + $0x258] sm:$0xff] %v611
        %804 = vst [vmem:[%s200 + $0x260] sm:$0xff] %v612
        %805 = vst [vmem:[%s200 + $0x268] sm:$0xff] %v613
        %806 = vst [vmem:[%s200 + $0x270] sm:$0xff] %v614
        %807 = vst [vmem:[%s200 + $0x278] sm:$0xff] %v615
        %808 = vst [vmem:[%s200 + $0x280] sm:$0xff] %v616
        %809 = vst [vmem:[%s200 + $0x288] sm:$0xff] %v617
        %810 = vst [vmem:[%s200 + $0x290] sm:$0xff] %v618
        %811 = vst [vmem:[%s200 + $0x298] sm:$0xff] %v619
        %812 = vst [vmem:[%s200 + $0x2a0] sm:$0xff] %v620
        %813 = vst [vmem:[%s200 + $0x2a8] sm:$0xff] %v621
        %814 = vst [vmem:[%s200 + $0x2b0] sm:$0xff] %v622
        %815 = vst [vmem:[%s200 + $0x2b8] sm:$0xff] %v623
        %816 = vst [vmem:[%s200 + $0x2c0] sm:$0xff] %v624
        %817 = vst [vmem:[%s200 + $0x2c8] sm:$0xff] %v625
        %818 = vst [vmem:[%s200 + $0x2d0] sm:$0xff] %v626
        %819 = vst [vmem:[%s200 + $0x2d8] sm:$0xff] %v627
        %820 = vst [vmem:[%s200 + $0x2e0] sm:$0xff] %v628
        %821 = vst [vmem:[%s200 + $0x2e8] sm:$0xff] %v629
        %822 = vst [vmem:[%s200 + $0x2f0] sm:$0xff] %v630
        %823 = vst [vmem:[%s200 + $0x2f8] sm:$0xff] %v631
        %824 = vst [vmem:[%s200 + $0x300] sm:$0xff] %v632
        %825 = vst [vmem:[%s200 + $0x308] sm:$0xff] %v633
        %826 = vst [vmem:[%s200 + $0x310] sm:$0xff] %v634
        %827 = vst [vmem:[%s200 + $0x318] sm:$0xff] %v635
        %828 = vst [vmem:[%s200 + $0x320] sm:$0xff] %v636
        %829 = vst [vmem:[%s200 + $0x328] sm:$0xff] %v637
        %830 = vst [vmem:[%s200 + $0x330] sm:$0xff] %v638
        %831 = vst [vmem:[%s200 + $0x338] sm:$0xff] %v639
        %832 = vst [vmem:[%s200 + $0x340] sm:$0xff] %v640
        %833 = vst [vmem:[%s200 + $0x348] sm:$0xff] %v641
        %834 = vst [vmem:[%s200 + $0x350] sm:$0xff] %v642
        %835 = vst [vmem:[%s200 + $0x358] sm:$0xff] %v643
        %836 = vst [vmem:[%s200 + $0x360] sm:$0xff] %v644
        %837 = vst [vmem:[%s200 + $0x368] sm:$0xff] %v645
        %838 = vst [vmem:[%s200 + $0x370] sm:$0xff] %v646
        %839 = vst [vmem:[%s200 + $0x378] sm:$0xff] %v647
        %840 = vst [vmem:[%s200 + $0x380] sm:$0xff] %v648
        %841 = vst [vmem:[%s200 + $0x388] sm:$0xff] %v649
        %842 = vst [vmem:[%s200 + $0x390] sm:$0xff] %v650
        %843 = vst [vmem:[%s200 + $0x398] sm:$0xff] %v651
        %844 = vst [vmem:[%s200 + $0x3a0] sm:$0xff] %v652
        %845 = vst [vmem:[%s200 + $0x3a8] sm:$0xff] %v653
        %846 = vst [vmem:[%s200 + $0x3b0] sm:$0xff] %v654
        %847 = vst [vmem:[%s200 + $0x3b8] sm:$0xff] %v655
        %848 = vst [vmem:[%s200 + $0x3c0] sm:$0xff] %v656
        %849 = vst [vmem:[%s200 + $0x3c8] sm:$0xff] %v657
        %850 = vst [vmem:[%s200 + $0x3d0] sm:$0xff] %v658
        %851 = vst [vmem:[%s200 + $0x3d8] sm:$0xff] %v659
        %852 = vst [vmem:[%s200 + $0x3e0] sm:$0xff] %v660
        %853 = vst [vmem:[%s200 + $0x3e8] sm:$0xff] %v661
        %854 = vst [vmem:[%s200 + $0x3f0] sm:$0xff] %v662
        %855 = vst [vmem:[%s200 + $0x3f8] sm:$0xff] %v663
        %856 = vst [vmem:[%s200 + $0x400] sm:$0xff] %v664
        %857 = vst [vmem:[%s200 + $0x408] sm:$0xff] %v665
        %858 = vst [vmem:[%s200 + $0x410] sm:$0xff] %v666
        %859 = vst [vmem:[%s200 + $0x418] sm:$0xff] %v667
        %860 = vst [vmem:[%s200 + $0x420] sm:$0xff] %v668
        %861 = vst [vmem:[%s200 + $0x428] sm:$0xff] %v669
        %862 = vst [vmem:[%s200 + $0x430] sm:$0xff] %v670
        %863 = vst [vmem:[%s200 + $0x438] sm:$0xff] %v671
        %864 = vst [vmem:[%s200 + $0x440] sm:$0xff] %v672
        %865 = vst [vmem:[%s200 + $0x448] sm:$0xff] %v673
        %866 = vst [vmem:[%s200 + $0x450] sm:$0xff] %v674
        %867 = vst [vmem:[%s200 + $0x458] sm:$0xff] %v675
        %868 = vst [vmem:[%s200 + $0x460] sm:$0xff] %v676
        %869 = vst [vmem:[%s200 + $0x468] sm:$0xff] %v677
        %870 = vst [vmem:[%s200 + $0x470] sm:$0xff] %v678
        %871 = vst [vmem:[%s200 + $0x478] sm:$0xff] %v679
        %872 = vst [vmem:[%s200 + $0x480] sm:$0xff] %v680
        %873 = vst [vmem:[%s200 + $0x488] sm:$0xff] %v681
        %874 = vst [vmem:[%s200 + $0x490] sm:$0xff] %v682
        %875 = vst [vmem:[%s200 + $0x498] sm:$0xff] %v683
        %876 = vst [vmem:[%s200 + $0x4a0] sm:$0xff] %v684
        %877 = vst [vmem:[%s200 + $0x4a8] sm:$0xff] %v685
        %878 = vst [vmem:[%s200 + $0x4b0] sm:$0xff] %v686
        %879 = vst [vmem:[%s200 + $0x4b8] sm:$0xff] %v687
        %880 = vst [vmem:[%s200 + $0x4c0] sm:$0xff] %v688
        %881 = vst [vmem:[%s200 + $0x4c8] sm:$0xff] %v689
        %882 = vst [vmem:[%s200 + $0x4d0] sm:$0xff] %v690
        %883 = vst [vmem:[%s200 + $0x4d8] sm:$0xff] %v691
        %884 = vst [vmem:[%s200 + $0x4e0] sm:$0xff] %v692
        %885 = vst [vmem:[%s200 + $0x4e8] sm:$0xff] %v693
        %886 = vst [vmem:[%s200 + $0x4f0] sm:$0xff] %v694
        %887 = vst [vmem:[%s200 + $0x4f8] sm:$0xff] %v695
        %888 = vst [vmem:[%s200 + $0x500] sm:$0xff] %v696
        %889 = vst [vmem:[%s200 + $0x508] sm:$0xff] %v697
        %890 = vst [vmem:[%s200 + $0x510] sm:$0xff] %v698
        %891 = vst [vmem:[%s200 + $0x518] sm:$0xff] %v699
        %892 = vst [vmem:[%s200 + $0x520] sm:$0xff] %v700
        %893 = vst [vmem:[%s200 + $0x528] sm:$0xff] %v701
        %894 = vst [vmem:[%s200 + $0x530] sm:$0xff] %v702
        %895 = vst [vmem:[%s200 + $0x538] sm:$0xff] %v703
        %896 = vst [vmem:[%s200 + $0x540] sm:$0xff] %v704
        %897 = vst [vmem:[%s200 + $0x548] sm:$0xff] %v705
        %898 = vst [vmem:[%s200 + $0x550] sm:$0xff] %v706
        %899 = vst [vmem:[%s200 + $0x558] sm:$0xff] %v707
        %900 = vst [vmem:[%s200 + $0x560] sm:$0xff] %v708
        %901 = vst [vmem:[%s200 + $0x568] sm:$0xff] %v709
        %902 = vst [vmem:[%s200 + $0x570] sm:$0xff] %v710
        %903 = vst [vmem:[%s200 + $0x578] sm:$0xff] %v711
        %904 = vst [vmem:[%s200 + $0x580] sm:$0xff] %v712
        %905 = vst [vmem:[%s200 + $0x588] sm:$0xff] %v713
        %906 = vst [vmem:[%s200 + $0x590] sm:$0xff] %v714
        %907 = vst [vmem:[%s200 + $0x598] sm:$0xff] %v715
        %908 = vst [vmem:[%s200 + $0x5a0] sm:$0xff] %v716
        %909 = vst [vmem:[%s200 + $0x5a8] sm:$0xff] %v717
        %910 = vst [vmem:[%s200 + $0x5b0] sm:$0xff] %v718
        %911 = vst [vmem:[%s200 + $0x5b8] sm:$0xff] %v719
        %912 = vst [vmem:[%s200 + $0x5c0] sm:$0xff] %v720
        %913 = vst [vmem:[%s200 + $0x5c8] sm:$0xff] %v721
        %914 = vst [vmem:[%s200 + $0x5d0] sm:$0xff] %v722
        %915 = vst [vmem:[%s200 + $0x5d8] sm:$0xff] %v723
        %916 = vst [vmem:[%s200 + $0x5e0] sm:$0xff] %v724
        %917 = vst [vmem:[%s200 + $0x5e8] sm:$0xff] %v725
        %918 = vst [vmem:[%s200 + $0x5f0] sm:$0xff] %v726
        %919 = vst [vmem:[%s200 + $0x5f8] sm:$0xff] %v727
        %s920 = sand.u32 %s114, 1
        %s921 = scalar_lea.sflag [#allocation5], %s920
        %s922 = sand.u32 %s114, 1
        %s923 = smul.addr %s922, 1536
        %s924 = scalar_lea.vmem [#allocation6], %s923
        // Predicated region
        $region37: #{tpu_custom_call.1} parent=31 // pred_check
          %p925 = pneg %p124
        $region38: #{tpu_custom_call.1} parent=31 // pred_check_branch
          %927 = sbr.rel (%p925) target = $region40
        $region39: #{tpu_custom_call.1} parent=31 // pred_region
          %s928 = smul.u32 32, %s23
          %s929 = smul.u32 6, %s24
          %s931 = ssub.s32 24576, 24576
          %932 = vsyncadd %s921, %s931
          %s933 = smul.addr %s928, 6
          %s934 = sadd.s32 %s929, %s933
          %s935 = smul.addr %s934, 128
          %s936 = scalar_lea.hbm %s3, %s935
          %s937 = sshll.u32 %s924, 4
          %s938 = int_to_ptr.vmem [resolvable:$true] %s937
          %943 = dma.vmem_to_hbm [thread:$0]  %s938, 24576, %s936, %s921, 768, 768, 48
        $region40: #{tpu_custom_call.1} parent=31 // pred_fallthru
          _
      $region32: #{tpu_custom_call.1} parent=5 // pred_fallthru
        _
      %p944 = scmp.le.s32.totalorder 2, %s14
      // Predicated region
      $region41: #{tpu_custom_call.1} parent=5 // pred_check
        %p945 = pneg %p944
      $region42: #{tpu_custom_call.1} parent=5 // pred_check_branch
        %947 = sbr.rel (%p945) target = $region44
      $region43: #{tpu_custom_call.1} parent=5 // pred_region
        %s948 = ssub.s32 %s14, 2
        // Predicated region
        $region45: #{tpu_custom_call.1} parent=43 // pred_check
          %p949 = pneg %p130
        $region46: #{tpu_custom_call.1} parent=43 // pred_check_branch
          %951 = sbr.rel (%p949) target = $region48
        $region47: #{tpu_custom_call.1} parent=43 // pred_region
          %s952 = sand.u32 %s115, 1
          %s953 = scalar_lea.sflag [#allocation5], %s952
          %s954 = sand.u32 %s115, 1
          %s955 = smul.addr %s954, 1536
          %s956 = scalar_lea.vmem [#allocation6], %s955
          %957 = dma.done %s953, 24576
        $region48: #{tpu_custom_call.1} parent=43 // pred_fallthru
          _
      $region44: #{tpu_custom_call.1} parent=5 // pred_fallthru
        _
    $region6: #{tpu_custom_call.1} parent=1 // loop_footer
      %s18 = sadd.s32 1, %s14
    $region7: #{tpu_custom_call.1} parent=1 // loop_footer_branch
      %13 = sbr.rel target = $region3
    $region8: #{tpu_custom_call.1} parent=1 // loop_exit
      _
    %958 = vsyncpa [#allocation4], 1
    %s959 = scalar_lea.sflag [#allocation4], 1
    %960 = vsyncpa %s959, 1
    %961 = vsyncpa [#allocation5], 1
    %s962 = scalar_lea.sflag [#allocation5], 1
    %963 = vsyncpa %s962, 1

</llo_original>
